<compile_context>
chip_gen: v5e
topology: v5e:2x2
jax: 0.10.0
libtpu: 0.0.40
codegen_flags: <defaults>
</compile_context>

<pallas_src>
import functools
import math

import jax
import jax.numpy as jnp
from jax import lax
from jax.experimental import pallas as pl
from jax.experimental.pallas import tpu as pltpu


def _round_up(v, m):
    return (v + m - 1) // m * m


def _pick_tile(total_128, cap):
    """Largest multiple of 128 that divides `total_128` and is <= cap."""
    cap = max(128, min(cap, total_128))
    best = 128
    for t in range(128, cap + 1, 128):
        if total_128 % t == 0:
            best = t
    return best


# ------------------------------- kernel ------------------------------------

def _noisy_linear_kernel(x_ref, wmu_ref, wsig_ref, ein_ref, eout_ref, b_ref,
                         o_ref):
    """One (i, j, k) grid step of y = x @ WmuT + eps_out*((x*eps_in) @ WsigT) + b.

    x_ref:    (tm, tk)  operand dtype (f32 or bf16, cast at the HBM boundary)
    wmu_ref:  (tk, tn)  pre-transposed weight_mu
    wsig_ref: (tk, tn)  pre-transposed weight_sigma
    ein_ref:  (1, tk)   factorized input noise (operand dtype)
    eout_ref: (1, tn)   factorized output noise (f32)
    b_ref:    (1, tn)   noisy bias = bias_mu + bias_sigma*bias_epsilon (f32)
    o_ref:    (tm, tn)  f32 output block, VMEM-resident across k (acts as acc)
    """
    k = pl.program_id(2)

    x = x_ref[...]
    xn = x * ein_ref[...]                      # noise-scaled activations

    y = jnp.dot(x, wmu_ref[...], preferred_element_type=jnp.float32)
    y += jnp.dot(xn, wsig_ref[...],
                 preferred_element_type=jnp.float32) * eout_ref[...]

    @pl.when(k == 0)
    def _first():
        o_ref[...] = y

    @pl.when(k > 0)
    def _accumulate():
        o_ref[...] += y

    @pl.when(k == pl.num_programs(2) - 1)
    def _add_bias():
        o_ref[...] += b_ref[...]


# ----------------------------- host wrappers --------------------------------

def prepare_noisy_linear(weight_mu, weight_sigma, eps_in, eps_out,
                         bias_mu, bias_sigma, bias_epsilon,
                         *, tn=None, tk=None, param_dtype=jnp.float32):
    """One-time (per reset_noise) preparation: pad + transpose + cast weights.

    Doing this once avoids per-forward O(N*K) pad/transpose/cast traffic.
    Returns a dict consumed by `noisy_linear_apply`.
    """
    N, K = weight_mu.shape
    n128 = _round_up(N, 128)
    k128 = _round_up(K, 128)

    if tn is None:
        # Keep >= 2 blocks along the (parallel) N axis when possible so both
        # v7x TensorCores get work even when the batch fits one M tile.
        cap_n = n128 if n128 <= 128 else min(512, n128 // 2)
        tn = _pick_tile(n128, cap_n)
    if tk is None:
        tk = _pick_tile(k128, min(1024, k128))

    Np = _round_up(N, tn)
    Kp = _round_up(K, tk)

    def pad_w(w):
        if (Np, Kp) != (N, K):
            w = jnp.pad(w, ((0, Np - N), (0, Kp - K)))
        return w

    # (K, N)-major so the kernel runs a plain (tm,tk)x(tk,tn) MXU matmul.
    wmu_t = pad_w(weight_mu).T.astype(param_dtype)      # (Kp, Np)
    wsig_t = pad_w(weight_sigma).T.astype(param_dtype)  # (Kp, Np)

    ein = jnp.pad(eps_in.astype(jnp.float32), (0, Kp - K))
    ein = ein.reshape(1, Kp).astype(param_dtype)
    eout = jnp.pad(eps_out.astype(jnp.float32), (0, Np - N)).reshape(1, Np)

    bias = (bias_mu + bias_sigma * bias_epsilon).astype(jnp.float32)
    bias = jnp.pad(bias, (0, Np - N)).reshape(1, Np)

    return dict(wmu_t=wmu_t, wsig_t=wsig_t, ein=ein, eout=eout, bias=bias,
                tn=tn, tk=tk, in_features=K, out_features=N)


def noisy_linear_apply(x, prep, *, tm=None, vmem_limit_bytes=48 * 1024 * 1024):
    """NoisyLinear forward: x (B, in) f32 -> (B, out) f32."""
    B, K = x.shape
    assert K == prep["in_features"]
    wmu_t, wsig_t = prep["wmu_t"], prep["wsig_t"]
    Kp, Np = wmu_t.shape
    tn, tk = prep["tn"], prep["tk"]
    N = prep["out_features"]

    if tm is None:
        # Whole (padded) batch in one M tile whenever it fits -> weights are
        # streamed from HBM exactly once per call.
        tm = min(512, _round_up(B, 8))
    Bp = _round_up(B, tm)

    # Cast activations to the operand dtype at the HBM boundary (not in-kernel).
    xp = x.astype(wmu_t.dtype)
    if (Bp, Kp) != (B, K):
        xp = jnp.pad(xp, ((0, Bp - B), (0, Kp - K)))

    grid = (Bp // tm, Np // tn, Kp // tk)   # K (reduction) axis last

    yp = pl.pallas_call(
        _noisy_linear_kernel,
        out_shape=jax.ShapeDtypeStruct((Bp, Np), jnp.float32),
        grid_spec=pltpu.PrefetchScalarGridSpec(
            num_scalar_prefetch=0,
            grid=grid,
            in_specs=[
                pl.BlockSpec((tm, tk), lambda i, j, k: (i, k)),   # x
                pl.BlockSpec((tk, tn), lambda i, j, k: (k, j)),   # weight_mu.T
                pl.BlockSpec((tk, tn), lambda i, j, k: (k, j)),   # weight_sigma.T
                pl.BlockSpec((1, tk), lambda i, j, k: (0, k)),    # eps_in
                pl.BlockSpec((1, tn), lambda i, j, k: (0, j)),    # eps_out
                pl.BlockSpec((1, tn), lambda i, j, k: (0, j)),    # noisy bias
            ],
            out_specs=pl.BlockSpec((tm, tn), lambda i, j, k: (i, j)),
        ),
        compiler_params=pltpu.CompilerParams(
            dimension_semantics=("parallel", "parallel", "arbitrary"),
            vmem_limit_bytes=vmem_limit_bytes,
        ),
    )(xp, wmu_t, wsig_t, prep["ein"], prep["eout"], prep["bias"])

    return yp[:B, :N]


# ----------------------------- plain-JAX glue -------------------------------

def scale_noise(key, size):
    """Factorized gaussian noise: sign(x) * sqrt(|x|), x ~ N(0,1)."""
    x = jax.random.normal(key, (size,), dtype=jnp.float32)
    return jnp.sign(x) * jnp.sqrt(jnp.abs(x))


def init_noisy_linear_params(key, in_features, out_features, std_init=0.5):
    """reset_parameters() + reset_noise() re-implemented in JAX."""
    k_wmu, k_bmu, k_ein, k_eout = jax.random.split(key, 4)
    mu_range = 1.0 / math.sqrt(in_features)

    weight_mu = jax.random.uniform(
        k_wmu, (out_features, in_features), jnp.float32, -mu_range, mu_range)
    weight_sigma = jnp.full((out_features, in_features),
                            std_init / math.sqrt(in_features), jnp.float32)
    bias_mu = jax.random.uniform(
        k_bmu, (out_features,), jnp.float32, -mu_range, mu_range)
    bias_sigma = jnp.full((out_features,),
                          std_init / math.sqrt(out_features), jnp.float32)

    eps_in = scale_noise(k_ein, in_features)      # (in,)
    eps_out = scale_noise(k_eout, out_features)   # (out,)
    bias_epsilon = eps_out                        # module: bias_epsilon = eps_out

    return dict(weight_mu=weight_mu, weight_sigma=weight_sigma,
                eps_in=eps_in, eps_out=eps_out,
                bias_mu=bias_mu, bias_sigma=bias_sigma,
                bias_epsilon=bias_epsilon)


def _reference(x, p):
    """Pure-JAX reference of the PyTorch forward (weight_epsilon = outer)."""
    weight_epsilon = jnp.outer(p["eps_out"], p["eps_in"])
    W = p["weight_mu"] + p["weight_sigma"] * weight_epsilon
    b = p["bias_mu"] + p["bias_sigma"] * p["bias_epsilon"]
    return jnp.dot(x, W.T, precision=lax.Precision.HIGHEST) + b


def _run_case(key, batch, in_features, out_features, *,
              param_dtype=jnp.float32, atol=1e-4, rtol=1e-4, **tile_kwargs):
    k_params, k_x = jax.random.split(key)
    p = init_noisy_linear_params(k_params, in_features, out_features)
    x = jax.random.normal(k_x, (batch, in_features), dtype=jnp.float32)

    prep_kwargs = {k: v for k, v in tile_kwargs.items() if k in ("tn", "tk")}
    apply_kwargs = {k: v for k, v in tile_kwargs.items() if k in ("tm",)}

    prep = prepare_noisy_linear(
        p["weight_mu"], p["weight_sigma"], p["eps_in"], p["eps_out"],
        p["bias_mu"], p["bias_sigma"], p["bias_epsilon"],
        param_dtype=param_dtype, **prep_kwargs)

    y = noisy_linear_apply(x, prep, **apply_kwargs)
    y = jax.block_until_ready(y)

    y_ref = _reference(x, p)
    assert y.shape == (batch, out_features)
    assert jnp.allclose(y, y_ref, atol=atol, rtol=rtol), (
        f"mismatch (dtype={param_dtype}): "
        f"max abs err {jnp.max(jnp.abs(y - y_ref))}")
    return y


if __name__ == "__main__":
    key = jax.random.PRNGKey(0)
    k1, k2, k3 = jax.random.split(key, 3)

    # 1) Small shapes matching the module (single-tile path, padded lane-dense).
    _run_case(k1, batch=8, in_features=32, out_features=64)

    # 2) Forced-small tiles to exercise the full (M, N, K) grid with K
    #    accumulation into the resident output block: grid = (3, 2, 3).
    _run_case(k2, batch=24, in_features=384, out_features=256,
              tm=8, tn=128, tk=128)

    # 3) bf16 weights on the wire (cast once at prepare time, f32 accumulation);
    #    looser tolerance, as NoisyNet numerics allow.
    _run_case(k3, batch=16, in_features=256, out_features=512,
              param_dtype=jnp.bfloat16, atol=3e-2, rtol=3e-2)

    print("KERNEL_OK")
</pallas_src>

<mosaic_0001>
module attributes {stable_mosaic.version = 11 : i64} {
  func.func @_noisy_linear_kernel(%arg0: i32, %arg1: i32, %arg2: i32, %arg3: memref<8x128xf32, #tpu.memory_space<vmem>>, %arg4: memref<128x128xf32, #tpu.memory_space<vmem>>, %arg5: memref<128x128xf32, #tpu.memory_space<vmem>>, %arg6: memref<1x128xf32, #tpu.memory_space<vmem>>, %arg7: memref<1x128xf32, #tpu.memory_space<vmem>>, %arg8: memref<1x128xf32, #tpu.memory_space<vmem>>, %arg9: memref<8x128xf32, #tpu.memory_space<vmem>>) attributes {dimension_semantics = [#tpu.dimension_semantics<parallel>, #tpu.dimension_semantics<parallel>, #tpu.dimension_semantics<arbitrary>], iteration_bounds = array<i64: 1, 1, 1>, scalar_prefetch = 0 : i64, scratch_operands = 0 : i64, tpu.core_type = #tpu.core_type<tc>, window_params = [{transform_indices = @transform_0, window_bounds = array<i64: 8, 128>}, {transform_indices = @transform_1, window_bounds = array<i64: 128, 128>}, {transform_indices = @transform_2, window_bounds = array<i64: 128, 128>}, {transform_indices = @transform_3, window_bounds = array<i64: 1, 128>}, {transform_indices = @transform_4, window_bounds = array<i64: 1, 128>}, {transform_indices = @transform_5, window_bounds = array<i64: 1, 128>}, {transform_indices = @transform_6, window_bounds = array<i64: 8, 128>}]} {
    %c0 = arith.constant 0 : index
    %c0_0 = arith.constant 0 : index
    %0 = vector.load %arg3[%c0, %c0_0] : memref<8x128xf32, #tpu.memory_space<vmem>>, vector<8x128xf32>
    %c0_1 = arith.constant 0 : index
    %c0_2 = arith.constant 0 : index
    %1 = vector.load %arg6[%c0_1, %c0_2] : memref<1x128xf32, #tpu.memory_space<vmem>>, vector<1x128xf32>
    %2 = vector.broadcast %1 : vector<1x128xf32> to vector<8x128xf32>
    %3 = arith.mulf %0, %2 : vector<8x128xf32>
    %c0_3 = arith.constant 0 : index
    %c0_4 = arith.constant 0 : index
    %4 = vector.load %arg4[%c0_3, %c0_4] : memref<128x128xf32, #tpu.memory_space<vmem>>, vector<128x128xf32>
    %cst = arith.constant dense<0.000000e+00> : vector<8x128xf32>
    %5 = tpu.matmul %0, %4, %cst {dimension_numbers = #tpu.dot_dimension_numbers<[1], [0], [0], [1], [0, 0, 1, 1], [], []>} : vector<8x128xf32>, vector<128x128xf32>, vector<8x128xf32> -> vector<8x128xf32>
    %c0_5 = arith.constant 0 : index
    %c0_6 = arith.constant 0 : index
    %6 = vector.load %arg5[%c0_5, %c0_6] : memref<128x128xf32, #tpu.memory_space<vmem>>, vector<128x128xf32>
    %cst_7 = arith.constant dense<0.000000e+00> : vector<8x128xf32>
    %7 = tpu.matmul %3, %6, %cst_7 {dimension_numbers = #tpu.dot_dimension_numbers<[1], [0], [0], [1], [0, 0, 1, 1], [], []>} : vector<8x128xf32>, vector<128x128xf32>, vector<8x128xf32> -> vector<8x128xf32>
    %c0_8 = arith.constant 0 : index
    %c0_9 = arith.constant 0 : index
    %8 = vector.load %arg7[%c0_8, %c0_9] : memref<1x128xf32, #tpu.memory_space<vmem>>, vector<1x128xf32>
    %9 = vector.broadcast %8 : vector<1x128xf32> to vector<8x128xf32>
    %10 = arith.mulf %7, %9 : vector<8x128xf32>
    %11 = arith.addf %5, %10 : vector<8x128xf32>
    %c0_i32 = arith.constant 0 : i32
    %12 = arith.cmpi eq, %arg2, %c0_i32 : i32
    %13 = arith.extui %12 : i1 to i32
    %c0_i32_10 = arith.constant 0 : i32
    %14 = arith.cmpi ne, %13, %c0_i32_10 : i32
    scf.if %14 {
      %c0_15 = arith.constant 0 : index
      %c0_16 = arith.constant 0 : index
      %21 = vector.load %arg9[%c0_15, %c0_16] : memref<8x128xf32, #tpu.memory_space<vmem>>, vector<8x128xf32>
      tpu.vector_store %arg9[%c0_15, %c0_16], %11 {strides = array<i32>} : memref<8x128xf32, #tpu.memory_space<vmem>>, vector<8x128xf32>,
    } else {
    }
    %c0_i32_11 = arith.constant 0 : i32
    %15 = arith.cmpi sgt, %arg2, %c0_i32_11 : i32
    %16 = arith.extui %15 : i1 to i32
    %c0_i32_12 = arith.constant 0 : i32
    %17 = arith.cmpi ne, %16, %c0_i32_12 : i32
    scf.if %17 {
      %c0_15 = arith.constant 0 : index
      %c0_16 = arith.constant 0 : index
      %21 = vector.load %arg9[%c0_15, %c0_16] : memref<8x128xf32, #tpu.memory_space<vmem>>, vector<8x128xf32>
      %22 = arith.addf %21, %11 : vector<8x128xf32>
      %c0_17 = arith.constant 0 : index
      %c0_18 = arith.constant 0 : index
      %23 = vector.load %arg9[%c0_17, %c0_18] : memref<8x128xf32, #tpu.memory_space<vmem>>, vector<8x128xf32>
      tpu.vector_store %arg9[%c0_17, %c0_18], %22 {strides = array<i32>} : memref<8x128xf32, #tpu.memory_space<vmem>>, vector<8x128xf32>,
    } else {
    }
    %c0_i32_13 = arith.constant 0 : i32
    %18 = arith.cmpi eq, %arg2, %c0_i32_13 : i32
    %19 = arith.extui %18 : i1 to i32
    %c0_i32_14 = arith.constant 0 : i32
    %20 = arith.cmpi ne, %19, %c0_i32_14 : i32
    scf.if %20 {
      %c0_15 = arith.constant 0 : index
      %c0_16 = arith.constant 0 : index
      %21 = vector.load %arg9[%c0_15, %c0_16] : memref<8x128xf32, #tpu.memory_space<vmem>>, vector<8x128xf32>
      %c0_17 = arith.constant 0 : index
      %c0_18 = arith.constant 0 : index
      %22 = vector.load %arg8[%c0_17, %c0_18] : memref<1x128xf32, #tpu.memory_space<vmem>>, vector<1x128xf32>
      %23 = vector.broadcast %22 : vector<1x128xf32> to vector<8x128xf32>
      %24 = arith.addf %21, %23 : vector<8x128xf32>
      %c0_19 = arith.constant 0 : index
      %c0_20 = arith.constant 0 : index
      %25 = vector.load %arg9[%c0_19, %c0_20] : memref<8x128xf32, #tpu.memory_space<vmem>>, vector<8x128xf32>
      tpu.vector_store %arg9[%c0_19, %c0_20], %24 {strides = array<i32>} : memref<8x128xf32, #tpu.memory_space<vmem>>, vector<8x128xf32>,
    } else {
    }
    return
  }
  func.func @transform_0(%arg0: i32, %arg1: i32, %arg2: i32) -> (i32, i32) {
    %c0_i32 = arith.constant 0 : i32
    return %arg0, %arg2 : i32, i32
  }
  func.func @transform_1(%arg0: i32, %arg1: i32, %arg2: i32) -> (i32, i32) {
    %c0_i32 = arith.constant 0 : i32
    return %arg2, %arg1 : i32, i32
  }
  func.func @transform_2(%arg0: i32, %arg1: i32, %arg2: i32) -> (i32, i32) {
    %c0_i32 = arith.constant 0 : i32
    return %arg2, %arg1 : i32, i32
  }
  func.func @transform_3(%arg0: i32, %arg1: i32, %arg2: i32) -> (i32, i32) {
    %c0_i32 = arith.constant 0 : i32
    %c0_i32_0 = arith.constant 0 : i32
    return %c0_i32, %arg2 : i32, i32
  }
  func.func @transform_4(%arg0: i32, %arg1: i32, %arg2: i32) -> (i32, i32) {
    %c0_i32 = arith.constant 0 : i32
    %c0_i32_0 = arith.constant 0 : i32
    return %c0_i32, %arg1 : i32, i32
  }
  func.func @transform_5(%arg0: i32, %arg1: i32, %arg2: i32) -> (i32, i32) {
    %c0_i32 = arith.constant 0 : i32
    %c0_i32_0 = arith.constant 0 : i32
    return %c0_i32, %arg1 : i32, i32
  }
  func.func @transform_6(%arg0: i32, %arg1: i32, %arg2: i32) -> (i32, i32) {
    %c0_i32 = arith.constant 0 : i32
    return %arg0, %arg1 : i32, i32
  }
}

</mosaic_0001>

<llo_original>
// kernel: tpu_custom_call.1
$region0: #{tpu_custom_call.1}
  #allocation0 [shape = 'u32[]', space=smem, size = 0x4, offset = 0x4, fixed_abs, tag = 'smem constant byte address 0x4 - core index']
  #allocation1 [shape = 'u32[72,128]{1,0:T(1,128)}', space=vmem, size = 0x9000, scoped, tag = 'internal scratch']
  %s0 = inlined_call_operand.hbm [shape: f32[8,128], index: 0, kind: input, shape index: {}]
  %s1 = inlined_call_operand.hbm [shape: f32[128,128], index: 1, kind: input, shape index: {}]
  %s2 = inlined_call_operand.hbm [shape: f32[128,128], index: 2, kind: input, shape index: {}]
  %s3 = inlined_call_operand.vmem [shape: f32[1,128], index: 3, kind: input, shape index: {}]
  %s4 = inlined_call_operand.vmem [shape: f32[1,128], index: 4, kind: input, shape index: {}]
  %s5 = inlined_call_operand.vmem [shape: f32[1,128], index: 5, kind: input, shape index: {}]
  %s6 = inlined_call_operand.hbm [shape: f32[8,128], index: 6, kind: output, shape index: {}]
  %s7 = sld [smem:[#allocation0]]
  $region58: #{tpu_custom_call.1} parent=0
    _
  %s9 = ssub.s32 1, %s7
  %s10 = scalar_select 0, %s9, %s7
  $region1: #{tpu_custom_call.1} parent=0
    #allocation2 [shape = 'u8[4096]{0}', space=vmem, size = 0x1000, scoped, tag = 'input window, operand 0, single buffered']
    #allocation3 [shape = 's32[1]{0}', space=sflag, size = 0x4, scoped, tag = 'scoped memory for tpu_custom_call.1']
    #allocation4 [shape = 's32[1]{0}', space=sflag, size = 0x4, scoped, tag = 'scoped memory for tpu_custom_call.1']
    #allocation5 [shape = 'u8[65536]{0}', space=vmem, size = 0x10000, scoped, tag = 'input window, operand 1, single buffered']
    #allocation6 [shape = 's32[1]{0}', space=sflag, size = 0x4, scoped, tag = 'scoped memory for tpu_custom_call.1']
    #allocation7 [shape = 'u8[65536]{0}', space=vmem, size = 0x10000, scoped, tag = 'input window, operand 2, single buffered']
    #allocation8 [shape = 'u8[4096]{0}', space=vmem, size = 0x1000, scoped, tag = 'output window, operand 0, single buffered']
    %11 = vsyncpa [#allocation3], 0
    %12 = vsyncpa [#allocation6], 0
    %13 = vsyncpa [#allocation4], 0
    // Predicated region
    $region2: #{tpu_custom_call.1} parent=1 // pred_check
      _
    $region3: #{tpu_custom_call.1} parent=1 // pred_check_branch
      %15 = sbr.rel (0) target = $region5
    $region4: #{tpu_custom_call.1} parent=1 // pred_region
      %17 = vsyncadd [#allocation3], 0
      %s19 = sshll.u32 %s0, 4
      %s20 = int_to_ptr.hbm [resolvable:$true] %s19
      %s21 = sshll.u32 [#allocation2], 4
      %s22 = int_to_ptr.vmem [resolvable:$true] %s21
      %24 = dma.hbm_to_vmem [thread:$0]  %s20, 128, %s22, [#allocation3]
    $region5: #{tpu_custom_call.1} parent=1 // pred_fallthru
      _
    // Predicated region
    $region6: #{tpu_custom_call.1} parent=1 // pred_check
      _
    $region7: #{tpu_custom_call.1} parent=1 // pred_check_branch
      %26 = sbr.rel (0) target = $region9
    $region8: #{tpu_custom_call.1} parent=1 // pred_region
      %28 = vsyncadd [#allocation6], 0
      %s29 = sshll.u32 %s1, 4
      %s30 = int_to_ptr.hbm [resolvable:$true] %s29
      %s31 = sshll.u32 [#allocation5], 4
      %s32 = int_to_ptr.vmem [resolvable:$true] %s31
      %37 = dma.hbm_to_vmem [thread:$0]  %s30, 2048, %s32, [#allocation6], 128, 128, 8
    $region9: #{tpu_custom_call.1} parent=1 // pred_fallthru
      _
    // Predicated region
    $region10: #{tpu_custom_call.1} parent=1 // pred_check
      _
    $region11: #{tpu_custom_call.1} parent=1 // pred_check_branch
      %39 = sbr.rel (0) target = $region13
    $region12: #{tpu_custom_call.1} parent=1 // pred_region
      %41 = vsyncadd [#allocation6], 0
      %s42 = sshll.u32 %s2, 4
      %s43 = int_to_ptr.hbm [resolvable:$true] %s42
      %s44 = sshll.u32 [#allocation7], 4
      %s45 = int_to_ptr.vmem [resolvable:$true] %s44
      %50 = dma.hbm_to_vmem [thread:$0]  %s43, 2048, %s45, [#allocation6], 128, 128, 8
    $region13: #{tpu_custom_call.1} parent=1 // pred_fallthru
      _
    // Predicated region
    $region14: #{tpu_custom_call.1} parent=1 // pred_check
      _
    $region15: #{tpu_custom_call.1} parent=1 // pred_check_branch
      %52 = sbr.rel (0) target = $region17
    $region16: #{tpu_custom_call.1} parent=1 // pred_region
      _
    $region17: #{tpu_custom_call.1} parent=1 // pred_fallthru
      _
    // Predicated region
    $region18: #{tpu_custom_call.1} parent=1 // pred_check
      _
    $region19: #{tpu_custom_call.1} parent=1 // pred_check_branch
      %54 = sbr.rel (0) target = $region21
    $region20: #{tpu_custom_call.1} parent=1 // pred_region
      _
    $region21: #{tpu_custom_call.1} parent=1 // pred_fallthru
      _
    // Predicated region
    $region22: #{tpu_custom_call.1} parent=1 // pred_check
      _
    $region23: #{tpu_custom_call.1} parent=1 // pred_check_branch
      %56 = sbr.rel (0) target = $region25
    $region24: #{tpu_custom_call.1} parent=1 // pred_region
      _
    $region25: #{tpu_custom_call.1} parent=1 // pred_fallthru
      _
    // Predicated region
    $region26: #{tpu_custom_call.1} parent=1 // pred_check
      _
    $region27: #{tpu_custom_call.1} parent=1 // pred_check_branch
      %58 = sbr.rel (0) target = $region29
    $region28: #{tpu_custom_call.1} parent=1 // pred_region
      %60 = dma.done [#allocation3], 128
    $region29: #{tpu_custom_call.1} parent=1 // pred_fallthru
      _
    // Predicated region
    $region30: #{tpu_custom_call.1} parent=1 // pred_check
      _
    $region31: #{tpu_custom_call.1} parent=1 // pred_check_branch
      %62 = sbr.rel (0) target = $region33
    $region32: #{tpu_custom_call.1} parent=1 // pred_region
      %64 = dma.done [#allocation6], 2048
    $region33: #{tpu_custom_call.1} parent=1 // pred_fallthru
      _
    // Predicated region
    $region34: #{tpu_custom_call.1} parent=1 // pred_check
      _
    $region35: #{tpu_custom_call.1} parent=1 // pred_check_branch
      %66 = sbr.rel (0) target = $region37
    $region36: #{tpu_custom_call.1} parent=1 // pred_region
      %68 = dma.done [#allocation6], 2048
    $region37: #{tpu_custom_call.1} parent=1 // pred_fallthru
      _
    %v69 = vld [vmem:[#allocation2] sm:$0xff]
    %v70 = vld [vmem:[%s3] sm:$0x1]
    %v72 = vperm.slane %v70, 0
    %v74 = vmul.f32 %v69, %v72
    %v75 = vld [vmem:[#allocation5] sm:$0xff]
    %v76 = vld [vmem:[#allocation5 + $0x8] sm:$0xff]
    %v77 = vld [vmem:[#allocation5 + $0x10] sm:$0xff]
    %v78 = vld [vmem:[#allocation5 + $0x18] sm:$0xff]
    %v79 = vld [vmem:[#allocation5 + $0x20] sm:$0xff]
    %v80 = vld [vmem:[#allocation5 + $0x28] sm:$0xff]
    %v81 = vld [vmem:[#allocation5 + $0x30] sm:$0xff]
    %v82 = vld [vmem:[#allocation5 + $0x38] sm:$0xff]
    %v83 = vld [vmem:[#allocation5 + $0x40] sm:$0xff]
    %v84 = vld [vmem:[#allocation5 + $0x48] sm:$0xff]
    %v85 = vld [vmem:[#allocation5 + $0x50] sm:$0xff]
    %v86 = vld [vmem:[#allocation5 + $0x58] sm:$0xff]
    %v87 = vld [vmem:[#allocation5 + $0x60] sm:$0xff]
    %v88 = vld [vmem:[#allocation5 + $0x68] sm:$0xff]
    %v89 = vld [vmem:[#allocation5 + $0x70] sm:$0xff]
    %v90 = vld [vmem:[#allocation5 + $0x78] sm:$0xff]
    %v91 = vld [vmem:[#allocation7] sm:$0xff]
    %v92 = vld [vmem:[#allocation7 + $0x8] sm:$0xff]
    %v93 = vld [vmem:[#allocation7 + $0x10] sm:$0xff]
    %v94 = vld [vmem:[#allocation7 + $0x18] sm:$0xff]
    %v95 = vld [vmem:[#allocation7 + $0x20] sm:$0xff]
    %v96 = vld [vmem:[#allocation7 + $0x28] sm:$0xff]
    %v97 = vld [vmem:[#allocation7 + $0x30] sm:$0xff]
    %v98 = vld [vmem:[#allocation7 + $0x38] sm:$0xff]
    %v99 = vld [vmem:[#allocation7 + $0x40] sm:$0xff]
    %v100 = vld [vmem:[#allocation7 + $0x48] sm:$0xff]
    %v101 = vld [vmem:[#allocation7 + $0x50] sm:$0xff]
    %v102 = vld [vmem:[#allocation7 + $0x58] sm:$0xff]
    %v103 = vld [vmem:[#allocation7 + $0x60] sm:$0xff]
    %v104 = vld [vmem:[#allocation7 + $0x68] sm:$0xff]
    %v105 = vld [vmem:[#allocation7 + $0x70] sm:$0xff]
    %v106 = vld [vmem:[#allocation7 + $0x78] sm:$0xff]
    %107 = vmatpush.msra.mxu0 %v106
    %108 = vmatpush.msra.mxu0 %v105
    %109 = vmatpush.msra.mxu0 %v104
    %110 = vmatpush.msra.mxu0 %v103
    %111 = vmatpush.msra.mxu0 %v102
    %112 = vmatpush.msra.mxu0 %v101
    %113 = vmatpush.msra.mxu0 %v100
    %114 = vmatpush.msra.mxu0 %v99
    %115 = vmatpush.msra.mxu0 %v98
    %116 = vmatpush.msra.mxu0 %v97
    %117 = vmatpush.msra.mxu0 %v96
    %118 = vmatpush.msra.mxu0 %v95
    %119 = vmatpush.msra.mxu0 %v94
    %120 = vmatpush.msra.mxu0 %v93
    %121 = vmatpush.msra.mxu0 %v92
    %122 = vmatpush.msra.mxu0 %v91
    %123 = vmatmul.f32.gmra.mxu0 %v74
    %v124 = vpop.f32.mrf.mxu0
    %v125 = vadd.f32 0.0, %v124
    %126 = vdwg.mxu0
    %v127 = vld [vmem:[%s4] sm:$0x1]
    %v129 = vperm.slane %v127, 0
    %v131 = vmul.f32 %v125, %v129
    %132 = vmatpush.msra.mxu0 %v90
    %133 = vmatpush.msra.mxu0 %v89
    %134 = vmatpush.msra.mxu0 %v88
    %135 = vmatpush.msra.mxu0 %v87
    %136 = vmatpush.msra.mxu0 %v86
    %137 = vmatpush.msra.mxu0 %v85
    %138 = vmatpush.msra.mxu0 %v84
    %139 = vmatpush.msra.mxu0 %v83
    %140 = vmatpush.msra.mxu0 %v82
    %141 = vmatpush.msra.mxu0 %v81
    %142 = vmatpush.msra.mxu0 %v80
    %143 = vmatpush.msra.mxu0 %v79
    %144 = vmatpush.msra.mxu0 %v78
    %145 = vmatpush.msra.mxu0 %v77
    %146 = vmatpush.msra.mxu0 %v76
    %147 = vmatpush.msra.mxu0 %v75
    %148 = vmatmul.f32.gmra.mxu0 %v69
    %v149 = vpop.f32.mrf.mxu0
    %v150 = vadd.f32 %v131, %v149
    %151 = vdwg.mxu0
    %p152 = scmp.eq.s32.totalorder 0, 0
    // Predicated region
    $region38: #{tpu_custom_call.1} parent=1 // pred_check
      %p153 = pneg %p152
    $region39: #{tpu_custom_call.1} parent=1 // pred_check_branch
      %155 = sbr.rel (%p153) target = $region41
    $region40: #{tpu_custom_call.1} parent=1 // pred_region
      %156 = vst [vmem:[#allocation8] sm:$0xff] %v150
    $region41: #{tpu_custom_call.1} parent=1 // pred_fallthru
      _
    %p157 = scmp.gt.s32.totalorder 0, 0
    // Predicated region
    $region42: #{tpu_custom_call.1} parent=1 // pred_check
      %p158 = pneg %p157
    $region43: #{tpu_custom_call.1} parent=1 // pred_check_branch
      %160 = sbr.rel (%p158) target = $region45
    $region44: #{tpu_custom_call.1} parent=1 // pred_region
      %v161 = vld [vmem:[#allocation8] sm:$0xff]
      %v162 = vadd.f32 %v161, %v150
      %163 = vst [vmem:[#allocation8] sm:$0xff] %v162
    $region45: #{tpu_custom_call.1} parent=1 // pred_fallthru
      _
    // Predicated region
    $region46: #{tpu_custom_call.1} parent=1 // pred_check
      %p164 = pneg %p152
    $region47: #{tpu_custom_call.1} parent=1 // pred_check_branch
      %166 = sbr.rel (%p164) target = $region49
    $region48: #{tpu_custom_call.1} parent=1 // pred_region
      %v167 = vld [vmem:[#allocation8] sm:$0xff]
      %v168 = vld [vmem:[%s5] sm:$0x1]
      %v170 = vperm.slane %v168, 0
      %v172 = vadd.f32 %v167, %v170
      %173 = vst [vmem:[#allocation8] sm:$0xff] %v172
    $region49: #{tpu_custom_call.1} parent=1 // pred_fallthru
      _
    // Predicated region
    $region50: #{tpu_custom_call.1} parent=1 // pred_check
      _
    $region51: #{tpu_custom_call.1} parent=1 // pred_check_branch
      %175 = sbr.rel (0) target = $region53
    $region52: #{tpu_custom_call.1} parent=1 // pred_region
      %177 = vsyncadd [#allocation4], 0
      %s179 = sshll.u32 [#allocation8], 4
      %s180 = int_to_ptr.vmem [resolvable:$true] %s179
      %s181 = sshll.u32 %s6, 4
      %s182 = int_to_ptr.hbm [resolvable:$true] %s181
      %184 = dma.vmem_to_hbm [thread:$0]  %s180, 128, %s182, [#allocation4]
    $region53: #{tpu_custom_call.1} parent=1 // pred_fallthru
      _
    // Predicated region
    $region54: #{tpu_custom_call.1} parent=1 // pred_check
      _
    $region55: #{tpu_custom_call.1} parent=1 // pred_check_branch
      %186 = sbr.rel (0) target = $region57
    $region56: #{tpu_custom_call.1} parent=1 // pred_region
      %188 = dma.done [#allocation4], 128
    $region57: #{tpu_custom_call.1} parent=1 // pred_fallthru
      _
    %189 = vsyncpa [#allocation3], 1
    %190 = vsyncpa [#allocation6], 1
    %191 = vsyncpa [#allocation4], 1

</llo_original>
